<compile_context>
chip_gen: v7x
topology: tpu7x:2x2x1
jax: 0.10.0
libtpu: 0.0.40
codegen_flags: <defaults>
</compile_context>

<pallas_src>
import jax
import jax.numpy as jnp
import numpy as np
from jax.experimental import pallas as pl
from jax.experimental.pallas import tpu as pltpu


def _round_up(v, m):
    return ((v + m - 1) // m) * m


def _affine_kernel(x_ref, w_ref, b_ref, o_ref):
    """o = W @ x + b for one lane tile.  W/b are resident (constant index_map)."""
    o_ref[...] = (
        jnp.dot(w_ref[...], x_ref[...], preferred_element_type=jnp.float32)
        + b_ref[...]
    ).astype(o_ref.dtype)


def _pick_tile_l(l_pad, in_ch, out_p, x_itemsize,
                 vmem_budget_bytes=12 * 1024 * 1024, max_tile=32768):
    """Largest 128-multiple lane tile whose double-buffered footprint fits a
    conservative VMEM budget (12 MiB < default scoped VMEM on v5e/v6e/v7x, so
    no vmem_limit override is needed on any generation)."""
    # double-buffered x block (compute dtype) + double-buffered f32 out block
    per_lane = 2 * in_ch * x_itemsize + 2 * out_p * 4
    tl = (vmem_budget_bytes // max(per_lane, 1)) // 128 * 128
    tl = max(128, min(tl, max_tile))
    if l_pad > 128:
        # Keep >= 2 grid steps when the problem allows it so the "parallel"
        # L axis can be split across both v7x TensorCores.
        half = ((l_pad // 128 + 1) // 2) * 128   # ceil(L/2) rounded up to 128
        tl = min(tl, half)
    return min(tl, l_pad)


def fused_affine_pallas(x2d, w_eff, b_eff):
    """x2d: (in_ch, L_pad) compute dtype; w_eff: (out_p, in_ch) compute dtype;
    b_eff: (out_p, 1) f32.  Returns (out_p, L_pad) f32 = w_eff @ x2d + b_eff.

    Requires L_pad % 128 == 0 and out_p % 8 == 0 (lane/sublane-dense store).
    """
    in_ch, l_pad = x2d.shape
    out_p = w_eff.shape[0]
    assert w_eff.shape == (out_p, in_ch), (w_eff.shape, (out_p, in_ch))
    assert b_eff.shape == (out_p, 1), b_eff.shape
    assert l_pad % 128 == 0, l_pad
    assert out_p % 8 == 0, out_p

    x_itemsize = jnp.dtype(x2d.dtype).itemsize
    tl = _pick_tile_l(l_pad, in_ch, out_p, x_itemsize)
    n_tiles = pl.cdiv(l_pad, tl)

    flops = 2 * out_p * in_ch * l_pad + out_p * l_pad
    bytes_accessed = (x_itemsize * (x2d.size + w_eff.size)
                      + 4 * (b_eff.size + out_p * l_pad))

    return pl.pallas_call(
        _affine_kernel,
        out_shape=jax.ShapeDtypeStruct((out_p, l_pad), jnp.float32),
        grid=(n_tiles,),
        in_specs=[
            pl.BlockSpec((in_ch, tl), lambda i: (0, i)),      # x: streamed over L
            pl.BlockSpec((out_p, in_ch), lambda i: (0, 0)),   # fused W: fetched once
            pl.BlockSpec((out_p, 1), lambda i: (0, 0)),       # fused b: fetched once
        ],
        out_specs=pl.BlockSpec((out_p, tl), lambda i: (0, i)),
        compiler_params=pltpu.CompilerParams(
            dimension_semantics=("parallel",)),
        cost_estimate=pl.CostEstimate(
            flops=flops, transcendentals=0, bytes_accessed=bytes_accessed),
    )(x2d, w_eff, b_eff)


class SinglePredPallas:
    """JAX/Pallas equivalent of tsff single_pred."""

    def __init__(self, d_model, hidden_size, num_classes, time_steps, num_layers,
                 key, compute_dtype=jnp.bfloat16, use_pallas="auto"):
        del time_steps  # unused by the original module's layer construction
        # Layer channel sizes: Conv1d(d_model^2 -> hidden), (num_layers-2) x
        # Conv1d(hidden -> hidden), Conv1d(hidden -> num_classes).
        in_dims = [d_model * d_model]
        out_dims = [hidden_size]
        if num_layers > 2:
            for _ in range(num_layers - 2):
                in_dims.append(hidden_size)
                out_dims.append(hidden_size)
        in_dims.append(hidden_size)
        out_dims.append(num_classes)

        self.num_classes = num_classes
        self.in_channels = d_model * d_model
        self.compute_dtype = compute_dtype
        self.use_pallas = use_pallas

        self.weights = []
        self.biases = []
        for cin, cout in zip(in_dims, out_dims):
            key, kw, kb = jax.random.split(key, 3)
            bound = 1.0 / np.sqrt(cin)  # PyTorch Conv1d default init, kernel_size=1
            w = jax.random.uniform(kw, (cout, cin), jnp.float32, -bound, bound)
            b = jax.random.uniform(kb, (cout, 1), jnp.float32, -bound, bound)
            self.weights.append(w)
            self.biases.append(b)

        # Fold the activation-free chain into a single affine map (done once).
        w_eff = self.weights[0]
        b_eff = self.biases[0]
        for w, b in zip(self.weights[1:], self.biases[1:]):
            w_eff = jnp.dot(w, w_eff, preferred_element_type=jnp.float32)
            b_eff = jnp.dot(w, b_eff, preferred_element_type=jnp.float32) + b

        # Pad output channels up to a multiple of 8 sublanes with zero rows so
        # the store is sublane-dense; the wrapper slices the padding off.
        # NOTE: the padded rows of BOTH W and b must stay zero.
        out_p = _round_up(num_classes, 8)
        pad = out_p - num_classes
        if pad:
            w_eff = jnp.concatenate(
                [w_eff, jnp.zeros((pad, w_eff.shape[1]), w_eff.dtype)], axis=0)
            b_eff = jnp.concatenate(
                [b_eff, jnp.zeros((pad, 1), b_eff.dtype)], axis=0)
        self.out_p = out_p
        self.w_eff = w_eff                                  # f32 (fast path / debug)
        self.w_eff_c = w_eff.astype(compute_dtype)          # bf16 for the kernel
        self.b_eff = b_eff                                  # bias kept in f32

    # -- fast-path policy ----------------------------------------------------
    def _small_fast_path(self, L):
        if self.use_pallas is True:
            return False
        if self.use_pallas is False:
            return True
        # auto: a few-KiB problem is dominated by launch overhead -> plain XLA.
        return self.in_channels * L <= 16 * 1024

    # -- forward -------------------------------------------------------------
    def forward(self, x):
        _x = x["attn_data"]            # (B, T, C)
        B, T, C = _x.shape
        # Same silent shape requirement as the PyTorch module's unbatched
        # Conv1d view — make it an explicit check.
        assert B == self.in_channels, (
            f"attn_data batch dim {B} must equal d_model^2={self.in_channels}")
        L = T * C
        x2d = _x.reshape(B, L)         # (channels, length), unbatched Conv1d view

        if self._small_fast_path(L):
            out_full = (jnp.dot(self.w_eff, x2d.astype(jnp.float32),
                                preferred_element_type=jnp.float32) + self.b_eff)
        else:
            l_pad = _round_up(L, 128)
            xc = x2d.astype(self.compute_dtype)
            if l_pad != L:
                xc = jnp.pad(xc, ((0, 0), (0, l_pad - L)))   # lane-dense store
            out_full = fused_affine_pallas(xc, self.w_eff_c, self.b_eff)
            if l_pad != L:
                out_full = out_full[:, :L]

        out = out_full[: self.num_classes]     # drop sublane-padding rows
        # Replicate the original module's behaviour exactly: the dict is
        # assigned to itself and the MLP result is not stored under a key.
        # TODO(synk): `x['output_data'] = x` in the source module discards the
        # MLP result; we return it additionally so it can be verified.
        x["output_data"] = x
        return x, out

    # -- references ----------------------------------------------------------
    def reference(self, x):
        """Full-f32 layer-by-layer reference (matches the PyTorch chain)."""
        _x = x["attn_data"]
        B, T, C = _x.shape
        h = _x.reshape(B, T * C).astype(jnp.float32)
        for w, b in zip(self.weights, self.biases):
            h = w @ h + b
        return h

    def reference_same_precision(self, x):
        """Folded affine map evaluated with the same bf16-rounded operands the
        kernel sees (exact f32 math on those operands)."""
        _x = x["attn_data"]
        B, T, C = _x.shape
        xc = _x.reshape(B, T * C).astype(self.compute_dtype).astype(jnp.float32)
        wc = self.w_eff_c.astype(jnp.float32)
        return (jnp.dot(wc, xc, preferred_element_type=jnp.float32)
                + self.b_eff)[: self.num_classes]


if __name__ == "__main__":
    d_model = 4
    hidden_size = 32
    num_classes = 4
    time_steps = 8
    num_layers = 3

    key = jax.random.PRNGKey(0)
    key, k_in = jax.random.split(key)

    # B must equal d_model*d_model for the module's Conv1d(k=1) chain to
    # typecheck on the 2-D (unbatched) view, exactly as in the PyTorch code.
    B = d_model * d_model          # 16
    T = time_steps                 # 8
    C = d_model                    # 4
    attn_data = jax.random.normal(k_in, (B, T, C), dtype=jnp.float32)

    # Force the Pallas path so the kernel itself is exercised at this toy size.
    model = SinglePredPallas(d_model, hidden_size, num_classes, time_steps,
                             num_layers, key, use_pallas=True)

    x = {"attn_data": attn_data}
    x_out, out = model.forward(x)
    out = jax.block_until_ready(out)

    # 1) Tight check against the same bf16-rounded operands (kernel math).
    ref_same = model.reference_same_precision({"attn_data": attn_data})
    np.testing.assert_allclose(np.asarray(out), np.asarray(ref_same),
                               rtol=1e-5, atol=1e-5)

    # 2) Loose check against the full-f32 per-layer PyTorch-equivalent chain
    #    (bf16 input/weight rounding dominates the difference; K=16 so tiny).
    ref_f32 = model.reference({"attn_data": attn_data})
    np.testing.assert_allclose(np.asarray(out), np.asarray(ref_f32),
                               rtol=2e-2, atol=2e-2)

    assert x_out["output_data"] is x_out  # original module's self-referential output
    print("KERNEL_OK")
</pallas_src>

<mosaic_0001>
module attributes {stable_mosaic.version = 11 : i64} {
  func.func @_affine_kernel(%arg0: i32, %arg1: memref<16x128xbf16, #tpu.memory_space<vmem>>, %arg2: memref<8x16xbf16, #tpu.memory_space<vmem>>, %arg3: memref<8x1xf32, #tpu.memory_space<vmem>>, %arg4: memref<8x128xf32, #tpu.memory_space<vmem>>) attributes {dimension_semantics = [#tpu.dimension_semantics<parallel>], iteration_bounds = array<i64: 1>, scalar_prefetch = 0 : i64, scratch_operands = 0 : i64, tpu.core_type = #tpu.core_type<tc>, window_params = [{transform_indices = @transform_0, window_bounds = array<i64: 16, 128>}, {pipeline_mode = #tpu.pipeline_mode<synchronous>, transform_indices = @transform_1, window_bounds = array<i64: 8, 16>}, {pipeline_mode = #tpu.pipeline_mode<synchronous>, transform_indices = @transform_2, window_bounds = array<i64: 8, 1>}, {transform_indices = @transform_3, window_bounds = array<i64: 8, 128>}]} {
    %c0 = arith.constant 0 : index
    %c0_0 = arith.constant 0 : index
    %0 = vector.load %arg2[%c0, %c0_0] : memref<8x16xbf16, #tpu.memory_space<vmem>>, vector<8x16xbf16>
    %c0_1 = arith.constant 0 : index
    %c0_2 = arith.constant 0 : index
    %1 = vector.load %arg1[%c0_1, %c0_2] : memref<16x128xbf16, #tpu.memory_space<vmem>>, vector<16x128xbf16>
    %cst = arith.constant dense<0.000000e+00> : vector<8x128xf32>
    %2 = tpu.matmul %0, %1, %cst {dimension_numbers = #tpu.dot_dimension_numbers<[1], [0], [0], [1], [0, 0, 1, 1], [], []>} : vector<8x16xbf16>, vector<16x128xbf16>, vector<8x128xf32> -> vector<8x128xf32>
    %c0_3 = arith.constant 0 : index
    %c0_4 = arith.constant 0 : index
    %3 = vector.load %arg3[%c0_3, %c0_4] : memref<8x1xf32, #tpu.memory_space<vmem>>, vector<8x1xf32>
    %4 = vector.broadcast %3 : vector<8x1xf32> to vector<8x128xf32>
    %5 = arith.addf %2, %4 : vector<8x128xf32>
    %c0_5 = arith.constant 0 : index
    %c0_6 = arith.constant 0 : index
    %6 = vector.load %arg4[%c0_5, %c0_6] : memref<8x128xf32, #tpu.memory_space<vmem>>, vector<8x128xf32>
    tpu.vector_store %arg4[%c0_5, %c0_6], %5 {strides = array<i32>} : memref<8x128xf32, #tpu.memory_space<vmem>>, vector<8x128xf32>,
    return
  }
  func.func @transform_0(%arg0: i32) -> (i32, i32) {
    %c0_i32 = arith.constant 0 : i32
    %c0_i32_0 = arith.constant 0 : i32
    return %c0_i32, %arg0 : i32, i32
  }
  func.func @transform_1(%arg0: i32) -> (i32, i32) {
    %c0_i32 = arith.constant 0 : i32
    %c0_i32_0 = arith.constant 0 : i32
    %c0_i32_1 = arith.constant 0 : i32
    return %c0_i32, %c0_i32_0 : i32, i32
  }
  func.func @transform_2(%arg0: i32) -> (i32, i32) {
    %c0_i32 = arith.constant 0 : i32
    %c0_i32_0 = arith.constant 0 : i32
    %c0_i32_1 = arith.constant 0 : i32
    return %c0_i32, %c0_i32_0 : i32, i32
  }
  func.func @transform_3(%arg0: i32) -> (i32, i32) {
    %c0_i32 = arith.constant 0 : i32
    %c0_i32_0 = arith.constant 0 : i32
    return %c0_i32, %arg0 : i32, i32
  }
}

</mosaic_0001>

<llo_original>
// kernel: tpu_custom_call.1
$region0: #{tpu_custom_call.1}
  #allocation0 [shape = 'u32[]', space=smem, size = 0x4, offset = 0x4, fixed_abs, tag = 'smem constant byte address 0x4 - core index']
  #allocation1 [shape = 'u32[144,128]{1,0:T(1,128)}', space=vmem, size = 0x12000, scoped, tag = 'internal scratch']
  %s0 = inlined_call_operand.vmem [shape: bf16[16,128], index: 0, kind: input, shape index: {}]
  %s1 = inlined_call_operand.vmem [shape: bf16[8,16], index: 1, kind: input, shape index: {}]
  %s2 = inlined_call_operand.vmem [shape: f32[8,1], index: 2, kind: input, shape index: {}]
  %s3 = inlined_call_operand.hbm [shape: f32[8,128], index: 3, kind: output, shape index: {}]
  %s4 = sld [smem:[#allocation0]]
  $region22: #{tpu_custom_call.1} parent=0
    _
  %s6 = ssub.s32 1, %s4
  %s7 = scalar_select 0, %s6, %s4
  $region1: #{tpu_custom_call.1} parent=0
    #allocation2 [shape = 'u8[4096]{0}', space=vmem, size = 0x1000, scoped, tag = 'output window, operand 0, single buffered']
    #allocation3 [shape = 's32[1]{0}', space=sflag, size = 0x4, scoped, tag = 'scoped memory for tpu_custom_call.1']
    %8 = vsyncpa [#allocation3], 0
    // Predicated region
    $region2: #{tpu_custom_call.1} parent=1 // pred_check
      _
    $region3: #{tpu_custom_call.1} parent=1 // pred_check_branch
      %10 = sbr.rel (0) target = $region5
    $region4: #{tpu_custom_call.1} parent=1 // pred_region
      _
    $region5: #{tpu_custom_call.1} parent=1 // pred_fallthru
      _
    // Predicated region
    $region6: #{tpu_custom_call.1} parent=1 // pred_check
      _
    $region7: #{tpu_custom_call.1} parent=1 // pred_check_branch
      %12 = sbr.rel (0) target = $region9
    $region8: #{tpu_custom_call.1} parent=1 // pred_region
      _
    $region9: #{tpu_custom_call.1} parent=1 // pred_fallthru
      _
    // Predicated region
    $region10: #{tpu_custom_call.1} parent=1 // pred_check
      _
    $region11: #{tpu_custom_call.1} parent=1 // pred_check_branch
      %14 = sbr.rel (0) target = $region13
    $region12: #{tpu_custom_call.1} parent=1 // pred_region
      _
    $region13: #{tpu_custom_call.1} parent=1 // pred_fallthru
      _
    %v16 = vld [vmem:[%s1] sm:$0xf]
    %v17 = vld [vmem:[%s0] sm:$0xf]
    %v18 = vld [vmem:[%s0 + $0x4] sm:$0xf]
    %v19 = vld [vmem:[%s2] sm:$0xff]
    %21 = vset.pattern.permute.xlu0 0
    %22 = vperm.xlu0 %21, %v19
    %v23 = vpop.permute.xlu0 %22
    %v27 = vunpack.c.l.b16 %v17
    %v28 = vunpack.c.l.b16 %v18
    %v29 = vpack.c.b16 %v28, %v27
    %vm31 = vcmask 130048
    %v33 = vsel %vm31, %v16, 0
    %35 = vmatprep.subr.bf16.mxu0 0
    %36 = vmatpush1.bf16.msra.mxu0 %v29
    %37 = vmatprep.subr.bf16.mxu0 0
    %38 = vmatpush1.bf16.msra.mxu0 0
    %39 = vmatprep.subr.bf16.mxu0 0
    %40 = vmatpush1.bf16.msra.mxu0 0
    %41 = vmatprep.subr.bf16.mxu0 0
    %42 = vmatpush1.bf16.msra.mxu0 0
    %43 = vmatprep.subr.bf16.mxu0 0
    %44 = vmatpush1.bf16.msra.mxu0 0
    %45 = vmatprep.subr.bf16.mxu0 0
    %46 = vmatpush1.bf16.msra.mxu0 0
    %47 = vmatprep.subr.bf16.mxu0 0
    %48 = vmatpush1.bf16.msra.mxu0 0
    %49 = vmatprep.subr.bf16.mxu0 0
    %50 = vmatpush1.bf16.msra.mxu0 0
    %51 = vmatprep.subr.bf16.mxu0 0
    %52 = vmatpush1.bf16.msra.mxu0 0
    %53 = vmatprep.subr.bf16.mxu0 0
    %54 = vmatpush1.bf16.msra.mxu0 0
    %55 = vmatprep.subr.bf16.mxu0 0
    %56 = vmatpush1.bf16.msra.mxu0 0
    %57 = vmatprep.subr.bf16.mxu0 0
    %58 = vmatpush1.bf16.msra.mxu0 0
    %59 = vmatprep.subr.bf16.mxu0 0
    %60 = vmatpush1.bf16.msra.mxu0 0
    %61 = vmatprep.subr.bf16.mxu0 0
    %62 = vmatpush1.bf16.msra.mxu0 0
    %63 = vmatprep.subr.bf16.mxu0 0
    %64 = vmatpush1.bf16.msra.mxu0 0
    %65 = vmatprep.subr.bf16.mxu0 0
    %66 = vmatpush1.bf16.msra.mxu0 0
    %67 = vmatprep.mubr.bf16.mxu0 0
    %68 = vmatmul.mubr.bf16.gmra.mrb[0].mxu0 %v33
    %v69 = vpop.f32.mrb[0].mxu0
    %v70 = vadd.f32 %v23, %v69
    %v71 = vpop.f32.mrb[0].mxu0
    %v72 = vpop.f32.mrb[0].mxu0
    %v73 = vpop.f32.mrb[0].mxu0
    %74 = vdwg.mxu0
    %75 = vst [vmem:[#allocation2] sm:$0xff] %v70
    // Predicated region
    $region14: #{tpu_custom_call.1} parent=1 // pred_check
      _
    $region15: #{tpu_custom_call.1} parent=1 // pred_check_branch
      %77 = sbr.rel (0) target = $region17
    $region16: #{tpu_custom_call.1} parent=1 // pred_region
      %s79 = ssub.s32 128, 128
      %80 = vsyncadd [#allocation3], %s79
      %s82 = sshll.u32 [#allocation2], 4
      %s83 = int_to_ptr.vmem [resolvable:$true] %s82
      %85 = dma.vmem_to_hbm [thread:$0]  %s83, 128, %s3, [#allocation3]
    $region17: #{tpu_custom_call.1} parent=1 // pred_fallthru
      _
    // Predicated region
    $region18: #{tpu_custom_call.1} parent=1 // pred_check
      _
    $region19: #{tpu_custom_call.1} parent=1 // pred_check_branch
      %87 = sbr.rel (0) target = $region21
    $region20: #{tpu_custom_call.1} parent=1 // pred_region
      %88 = dma.done [#allocation3], 128
    $region21: #{tpu_custom_call.1} parent=1 // pred_fallthru
      _
    %89 = vsyncpa [#allocation3], 1

</llo_original>
